<compile_context>
chip_gen: v7x
topology: tpu7x:2x2x1
jax: 0.10.0
libtpu: 0.0.40
codegen_flags: <defaults>
</compile_context>

<pallas_src>
import jax
import jax.numpy as jnp
from jax.experimental import pallas as pl
from jax.experimental.pallas import tpu as pltpu

_SUB_ROWS = 128  # rows per in-kernel sub-block


def _round_up(n, m):
    return ((n + m - 1) // m) * m


def regressor_kernel(x_ref,
                     w1_ref, b1_ref,
                     w2_ref, b2_ref,
                     w3_ref, b3_ref,
                     w4t_ref, b4t_ref,
                     o_ref):
    """Fused (fc + folded BN) -> ReLU x3 -> fc4 on one batch tile.

    The tile is processed in 128-row sub-blocks (bounds activation live ranges); the final
    layer is computed transposed so the output store is lane-dense over the batch dim and
    only the real output columns are written. Dropout = eval-mode identity.
    """
    tile = x_ref.shape[0]
    n_sub = tile // _SUB_ROWS
    for s in range(n_sub):                      # static unroll, n_sub <= batch_tile/128
        r0 = s * _SUB_ROWS
        x = x_ref[pl.ds(r0, _SUB_ROWS), :].astype(jnp.bfloat16)   # (128, in_dim)

        h = jnp.dot(x, w1_ref[...], preferred_element_type=jnp.float32) + b1_ref[...]
        h = jnp.maximum(h, 0.0)
        # TODO(synk): training-mode (batch-stat BN, stochastic Dropout p=0.2) not implemented.
        h = jnp.dot(h.astype(jnp.bfloat16), w2_ref[...],
                    preferred_element_type=jnp.float32) + b2_ref[...]
        h = jnp.maximum(h, 0.0)
        h = jnp.dot(h.astype(jnp.bfloat16), w3_ref[...],
                    preferred_element_type=jnp.float32) + b3_ref[...]
        h = jnp.maximum(h, 0.0)                                    # (128, d3)

        # Final layer, transposed: (out_dim, 128) = w4^T @ h^T. Lane-dense store, no
        # padded output columns.
        h_t = h.T.astype(jnp.bfloat16)                             # (d3, 128)
        out_t = jnp.dot(w4t_ref[...], h_t,
                        preferred_element_type=jnp.float32) + b4t_ref[...]
        o_ref[:, pl.ds(r0, _SUB_ROWS)] = out_t.astype(o_ref.dtype)


def fold_and_pad_params(params):
    """Fold BN into the Linears, pad hidden widths to 128 multiples, cast weights to bf16.

    Padded bias/shift columns are exactly 0, so ReLU keeps padded hidden lanes at 0 and the
    padded rows of the next layer's weights multiply zeros -> numerics of the real slice
    unchanged. The last layer is stored transposed (out_dim, d3_pad) with no column padding.
    """
    folded = {}
    prev_out = None
    for layer in range(1, 4):
        w = params[f"w{layer}"]            # (in, out) f32
        b = params[f"b{layer}"]            # (1, out) f32
        s = params[f"s{layer}"]            # (1, out) BN scale
        t = params[f"t{layer}"]            # (1, out) BN shift
        w = w * s
        b = b * s + t
        in_p = w.shape[0] if layer == 1 else _round_up(w.shape[0], 128)
        out_p = _round_up(w.shape[1], 128)
        w = jnp.pad(w, ((0, in_p - w.shape[0]), (0, out_p - w.shape[1])))
        b = jnp.pad(b, ((0, 0), (0, out_p - b.shape[1])))
        folded[f"w{layer}"] = w.astype(jnp.bfloat16)
        folded[f"b{layer}"] = b.astype(jnp.float32)
        prev_out = out_p
    w4 = params["w4"]                      # (d3, out_dim)
    b4 = params["b4"]                      # (1, out_dim)
    w4 = jnp.pad(w4, ((0, prev_out - w4.shape[0]), (0, 0)))
    folded["w4t"] = w4.T.astype(jnp.bfloat16)    # (out_dim, d3_pad)
    folded["b4t"] = b4.T.astype(jnp.float32)     # (out_dim, 1)
    return folded


def regressor_forward(x, folded_params, *, batch_tile=512):
    """x: (B, in_dim) f32. Returns (out_dim, B_pad) f32; caller takes [:, :B].T."""
    B, in_dim = x.shape
    out_dim = folded_params["w4t"].shape[0]

    # Tile selection: multiples of the 128-row sub-block; big tiles amortize per-step
    # overhead; guarantee >= 2 grid steps when there is enough work (v7x has 2 TCs).
    batch_tile = max(_SUB_ROWS, _round_up(batch_tile, _SUB_ROWS))
    B_sub = _round_up(B, _SUB_ROWS)
    tile = min(batch_tile, B_sub)
    if B_sub >= 2 * _SUB_ROWS:
        tile = min(tile, _round_up(pl.cdiv(B_sub, 2), _SUB_ROWS))
    B_pad = _round_up(B, tile)
    if B_pad != B:
        # Zero-pad the batch only; feature dim stays in_dim, dtype stays f32 (no extra pass).
        x = jnp.pad(x, ((0, B_pad - B), (0, 0)))

    operand_order = ["w1", "b1", "w2", "b2", "w3", "b3", "w4t", "b4t"]
    operands = [folded_params[k] for k in operand_order]

    def const_spec(shape):
        # Weights/biases: same full block every grid step -> fetched once, single-buffered.
        return pl.BlockSpec(shape, lambda i, _n=len(shape): (0,) * _n,
                            pipeline_mode=pl.Buffered(1))

    d1 = folded_params["w1"].shape[1]
    d2 = folded_params["w2"].shape[1]
    d3 = folded_params["w3"].shape[1]
    flops = 2 * B_pad * (in_dim * d1 + d1 * d2 + d2 * d3 + d3 * out_dim)
    bytes_accessed = (int(x.size) * x.dtype.itemsize
                      + sum(int(p.size) * p.dtype.itemsize for p in operands)
                      + out_dim * B_pad * 4)

    return pl.pallas_call(
        regressor_kernel,
        out_shape=jax.ShapeDtypeStruct((out_dim, B_pad), jnp.float32),
        grid_spec=pl.GridSpec(
            grid=(B_pad // tile,),
            in_specs=[pl.BlockSpec((tile, in_dim), lambda i: (i, 0))]
                     + [const_spec(p.shape) for p in operands],
            out_specs=pl.BlockSpec((out_dim, tile), lambda i: (0, i)),
        ),
        compiler_params=pltpu.CompilerParams(
            dimension_semantics=("parallel",)),
        cost_estimate=pl.CostEstimate(flops=int(flops), transcendentals=0,
                                      bytes_accessed=int(bytes_accessed)),
    )(x, *operands)


def make_params(key, in_dim, out_dim, filt=(100, 300, 100), eps=1e-5):
    """Deterministic synthetic parameters matching the PyTorch module's shapes.

    Weights are stored pre-transposed as (in, out); BatchNorm running stats are expressed
    as per-channel scale/shift (s, t) exactly as eval-mode BatchNorm1d computes them.
    """
    dims = [in_dim, filt[0], filt[1], filt[2], out_dim]
    keys = jax.random.split(key, 32)
    ki = iter(range(32))
    params = {}
    for layer in range(4):
        fan_in, fan_out = dims[layer], dims[layer + 1]
        bound = 1.0 / jnp.sqrt(fan_in)
        w = jax.random.uniform(keys[next(ki)], (fan_in, fan_out),
                               minval=-bound, maxval=bound, dtype=jnp.float32)
        b = jax.random.uniform(keys[next(ki)], (1, fan_out),
                               minval=-bound, maxval=bound, dtype=jnp.float32)
        params[f"w{layer + 1}"] = w
        params[f"b{layer + 1}"] = b
        if layer < 3:
            gamma = 1.0 + 0.1 * jax.random.normal(keys[next(ki)], (1, fan_out), jnp.float32)
            beta = 0.1 * jax.random.normal(keys[next(ki)], (1, fan_out), jnp.float32)
            rmean = 0.05 * jax.random.normal(keys[next(ki)], (1, fan_out), jnp.float32)
            rvar = 1.0 + 0.1 * jax.random.uniform(keys[next(ki)], (1, fan_out), jnp.float32)
            scale = gamma / jnp.sqrt(rvar + eps)
            shift = beta - rmean * scale
            params[f"s{layer + 1}"] = scale
            params[f"t{layer + 1}"] = shift
    return params


def reference_forward(x, params):
    """Pure-JAX reference mirroring the kernel's numerics (bf16 matmul inputs, f32 accumulate)."""
    h = x
    for layer in range(1, 4):
        w = (params[f"w{layer}"] * params[f"s{layer}"]).astype(jnp.bfloat16)
        b = params[f"b{layer}"] * params[f"s{layer}"] + params[f"t{layer}"]
        h = jnp.dot(h.astype(jnp.bfloat16), w, preferred_element_type=jnp.float32) + b
        h = jnp.maximum(h, 0.0)
    w4 = params["w4"].astype(jnp.bfloat16)
    return jnp.dot(h.astype(jnp.bfloat16), w4,
                   preferred_element_type=jnp.float32) + params["b4"]


if __name__ == "__main__":
    key = jax.random.PRNGKey(0)
    k_x, k_p = jax.random.split(key)

    B, in_dim, out_dim = 16, 32, 8
    x = jax.random.normal(k_x, (B, in_dim), dtype=jnp.float32)
    raw_params = make_params(k_p, in_dim, out_dim)
    folded_params = fold_and_pad_params(raw_params)

    out_t = regressor_forward(x, folded_params, batch_tile=512)   # (out_dim, B_pad)
    out_t = jax.block_until_ready(out_t)
    out = out_t[:, :B].T                                          # (B, out_dim)

    ref = reference_forward(x, raw_params)
    assert out.shape == (B, out_dim)
    assert jnp.allclose(out, ref, atol=2e-3, rtol=2e-3), "mismatch vs reference"

    print("KERNEL_OK")
</pallas_src>

<mosaic_0001>
module attributes {stable_mosaic.version = 11 : i64} {
  func.func @regressor_kernel(%arg0: i32, %arg1: memref<128x32xf32, #tpu.memory_space<vmem>>, %arg2: memref<32x128xbf16, #tpu.memory_space<vmem>>, %arg3: memref<1x128xf32, #tpu.memory_space<vmem>>, %arg4: memref<128x384xbf16, #tpu.memory_space<vmem>>, %arg5: memref<1x384xf32, #tpu.memory_space<vmem>>, %arg6: memref<384x128xbf16, #tpu.memory_space<vmem>>, %arg7: memref<1x128xf32, #tpu.memory_space<vmem>>, %arg8: memref<8x128xbf16, #tpu.memory_space<vmem>>, %arg9: memref<8x1xf32, #tpu.memory_space<vmem>>, %arg10: memref<8x128xf32, #tpu.memory_space<vmem>>) attributes {dimension_semantics = [#tpu.dimension_semantics<parallel>], iteration_bounds = array<i64: 1>, scalar_prefetch = 0 : i64, scratch_operands = 0 : i64, tpu.core_type = #tpu.core_type<tc>, window_params = [{transform_indices = @transform_0, window_bounds = array<i64: 128, 32>}, {pipeline_mode = #tpu.pipeline_mode<synchronous>, transform_indices = @transform_1, window_bounds = array<i64: 32, 128>}, {pipeline_mode = #tpu.pipeline_mode<synchronous>, transform_indices = @transform_2, window_bounds = array<i64: 1, 128>}, {pipeline_mode = #tpu.pipeline_mode<synchronous>, transform_indices = @transform_3, window_bounds = array<i64: 128, 384>}, {pipeline_mode = #tpu.pipeline_mode<synchronous>, transform_indices = @transform_4, window_bounds = array<i64: 1, 384>}, {pipeline_mode = #tpu.pipeline_mode<synchronous>, transform_indices = @transform_5, window_bounds = array<i64: 384, 128>}, {pipeline_mode = #tpu.pipeline_mode<synchronous>, transform_indices = @transform_6, window_bounds = array<i64: 1, 128>}, {pipeline_mode = #tpu.pipeline_mode<synchronous>, transform_indices = @transform_7, window_bounds = array<i64: 8, 128>}, {pipeline_mode = #tpu.pipeline_mode<synchronous>, transform_indices = @transform_8, window_bounds = array<i64: 8, 1>}, {transform_indices = @transform_9, window_bounds = array<i64: 8, 128>}]} {
    %c0 = arith.constant 0 : index
    %c0_0 = arith.constant 0 : index
    %0 = vector.load %arg1[%c0, %c0_0] : memref<128x32xf32, #tpu.memory_space<vmem>>, vector<128x32xf32>
    %1 = arith.truncf %0 : vector<128x32xf32> to vector<128x32xbf16>
    %c0_1 = arith.constant 0 : index
    %c0_2 = arith.constant 0 : index
    %2 = vector.load %arg2[%c0_1, %c0_2] : memref<32x128xbf16, #tpu.memory_space<vmem>>, vector<32x128xbf16>
    %cst = arith.constant dense<0.000000e+00> : vector<128x128xf32>
    %3 = tpu.matmul %1, %2, %cst {dimension_numbers = #tpu.dot_dimension_numbers<[1], [0], [0], [1], [0, 0, 1, 1], [], []>} : vector<128x32xbf16>, vector<32x128xbf16>, vector<128x128xf32> -> vector<128x128xf32>
    %c0_3 = arith.constant 0 : index
    %c0_4 = arith.constant 0 : index
    %4 = vector.load %arg3[%c0_3, %c0_4] : memref<1x128xf32, #tpu.memory_space<vmem>>, vector<1x128xf32>
    %5 = vector.broadcast %4 : vector<1x128xf32> to vector<128x128xf32>
    %6 = arith.addf %3, %5 : vector<128x128xf32>
    %cst_5 = arith.constant 0.000000e+00 : f32
    %7 = vector.broadcast %cst_5 : f32 to vector<128x128xf32>
    %8 = arith.maximumf %6, %7 : vector<128x128xf32>
    %9 = arith.truncf %8 : vector<128x128xf32> to vector<128x128xbf16>
    %c0_6 = arith.constant 0 : index
    %c0_7 = arith.constant 0 : index
    %10 = vector.load %arg4[%c0_6, %c0_7] : memref<128x384xbf16, #tpu.memory_space<vmem>>, vector<128x384xbf16>
    %cst_8 = arith.constant dense<0.000000e+00> : vector<128x384xf32>
    %11 = tpu.matmul %9, %10, %cst_8 {dimension_numbers = #tpu.dot_dimension_numbers<[1], [0], [0], [1], [0, 0, 1, 1], [], []>} : vector<128x128xbf16>, vector<128x384xbf16>, vector<128x384xf32> -> vector<128x384xf32>
    %c0_9 = arith.constant 0 : index
    %c0_10 = arith.constant 0 : index
    %12 = vector.load %arg5[%c0_9, %c0_10] : memref<1x384xf32, #tpu.memory_space<vmem>>, vector<1x384xf32>
    %13 = vector.broadcast %12 : vector<1x384xf32> to vector<128x384xf32>
    %14 = arith.addf %11, %13 : vector<128x384xf32>
    %cst_11 = arith.constant 0.000000e+00 : f32
    %15 = vector.broadcast %cst_11 : f32 to vector<128x384xf32>
    %16 = arith.maximumf %14, %15 : vector<128x384xf32>
    %17 = arith.truncf %16 : vector<128x384xf32> to vector<128x384xbf16>
    %c0_12 = arith.constant 0 : index
    %c0_13 = arith.constant 0 : index
    %18 = vector.load %arg6[%c0_12, %c0_13] : memref<384x128xbf16, #tpu.memory_space<vmem>>, vector<384x128xbf16>
    %cst_14 = arith.constant dense<0.000000e+00> : vector<128x128xf32>
    %19 = tpu.matmul %17, %18, %cst_14 {dimension_numbers = #tpu.dot_dimension_numbers<[1], [0], [0], [1], [0, 0, 1, 1], [], []>} : vector<128x384xbf16>, vector<384x128xbf16>, vector<128x128xf32> -> vector<128x128xf32>
    %c0_15 = arith.constant 0 : index
    %c0_16 = arith.constant 0 : index
    %20 = vector.load %arg7[%c0_15, %c0_16] : memref<1x128xf32, #tpu.memory_space<vmem>>, vector<1x128xf32>
    %21 = vector.broadcast %20 : vector<1x128xf32> to vector<128x128xf32>
    %22 = arith.addf %19, %21 : vector<128x128xf32>
    %cst_17 = arith.constant 0.000000e+00 : f32
    %23 = vector.broadcast %cst_17 : f32 to vector<128x128xf32>
    %24 = arith.maximumf %22, %23 : vector<128x128xf32>
    %25 = tpu.transpose %24, [1, 0] : vector<128x128xf32> -> vector<128x128xf32>
    %26 = arith.truncf %25 : vector<128x128xf32> to vector<128x128xbf16>
    %c0_18 = arith.constant 0 : index
    %c0_19 = arith.constant 0 : index
    %27 = vector.load %arg8[%c0_18, %c0_19] : memref<8x128xbf16, #tpu.memory_space<vmem>>, vector<8x128xbf16>
    %cst_20 = arith.constant dense<0.000000e+00> : vector<8x128xf32>
    %28 = tpu.matmul %27, %26, %cst_20 {dimension_numbers = #tpu.dot_dimension_numbers<[1], [0], [0], [1], [0, 0, 1, 1], [], []>} : vector<8x128xbf16>, vector<128x128xbf16>, vector<8x128xf32> -> vector<8x128xf32>
    %c0_21 = arith.constant 0 : index
    %c0_22 = arith.constant 0 : index
    %29 = vector.load %arg9[%c0_21, %c0_22] : memref<8x1xf32, #tpu.memory_space<vmem>>, vector<8x1xf32>
    %30 = vector.broadcast %29 : vector<8x1xf32> to vector<8x128xf32>
    %31 = arith.addf %28, %30 : vector<8x128xf32>
    %c0_23 = arith.constant 0 : index
    %c0_24 = arith.constant 0 : index
    %32 = vector.load %arg10[%c0_23, %c0_24] : memref<8x128xf32, #tpu.memory_space<vmem>>, vector<8x128xf32>
    tpu.vector_store %arg10[%c0_23, %c0_24], %31 {strides = array<i32>} : memref<8x128xf32, #tpu.memory_space<vmem>>, vector<8x128xf32>,
    return
  }
  func.func @transform_0(%arg0: i32) -> (i32, i32) {
    %c0_i32 = arith.constant 0 : i32
    %c0_i32_0 = arith.constant 0 : i32
    return %arg0, %c0_i32 : i32, i32
  }
  func.func @transform_1(%arg0: i32) -> (i32, i32) {
    %c0_i32 = arith.constant 0 : i32
    %c0_i32_0 = arith.constant 0 : i32
    %c0_i32_1 = arith.constant 0 : i32
    return %c0_i32, %c0_i32_0 : i32, i32
  }
  func.func @transform_2(%arg0: i32) -> (i32, i32) {
    %c0_i32 = arith.constant 0 : i32
    %c0_i32_0 = arith.constant 0 : i32
    %c0_i32_1 = arith.constant 0 : i32
    return %c0_i32, %c0_i32_0 : i32, i32
  }
  func.func @transform_3(%arg0: i32) -> (i32, i32) {
    %c0_i32 = arith.constant 0 : i32
    %c0_i32_0 = arith.constant 0 : i32
    %c0_i32_1 = arith.constant 0 : i32
    return %c0_i32, %c0_i32_0 : i32, i32
  }
  func.func @transform_4(%arg0: i32) -> (i32, i32) {
    %c0_i32 = arith.constant 0 : i32
    %c0_i32_0 = arith.constant 0 : i32
    %c0_i32_1 = arith.constant 0 : i32
    return %c0_i32, %c0_i32_0 : i32, i32
  }
  func.func @transform_5(%arg0: i32) -> (i32, i32) {
    %c0_i32 = arith.constant 0 : i32
    %c0_i32_0 = arith.constant 0 : i32
    %c0_i32_1 = arith.constant 0 : i32
    return %c0_i32, %c0_i32_0 : i32, i32
  }
  func.func @transform_6(%arg0: i32) -> (i32, i32) {
    %c0_i32 = arith.constant 0 : i32
    %c0_i32_0 = arith.constant 0 : i32
    %c0_i32_1 = arith.constant 0 : i32
    return %c0_i32, %c0_i32_0 : i32, i32
  }
  func.func @transform_7(%arg0: i32) -> (i32, i32) {
    %c0_i32 = arith.constant 0 : i32
    %c0_i32_0 = arith.constant 0 : i32
    %c0_i32_1 = arith.constant 0 : i32
    return %c0_i32, %c0_i32_0 : i32, i32
  }
  func.func @transform_8(%arg0: i32) -> (i32, i32) {
    %c0_i32 = arith.constant 0 : i32
    %c0_i32_0 = arith.constant 0 : i32
    %c0_i32_1 = arith.constant 0 : i32
    return %c0_i32, %c0_i32_0 : i32, i32
  }
  func.func @transform_9(%arg0: i32) -> (i32, i32) {
    %c0_i32 = arith.constant 0 : i32
    %c0_i32_0 = arith.constant 0 : i32
    return %c0_i32, %arg0 : i32, i32
  }
}

</mosaic_0001>

<llo_original>
// kernel: tpu_custom_call.1
$region0: #{tpu_custom_call.1}
  #allocation0 [shape = 'u32[]', space=smem, size = 0x4, offset = 0x4, fixed_abs, tag = 'smem constant byte address 0x4 - core index']
  #allocation1 [shape = 'u32[144,128]{1,0:T(1,128)}', space=vmem, size = 0x12000, scoped, tag = 'internal scratch']
  %s0 = inlined_call_operand.vmem [shape: f32[128,32], index: 0, kind: input, shape index: {}]
  %s1 = inlined_call_operand.vmem [shape: bf16[32,128], index: 1, kind: input, shape index: {}]
  %s2 = inlined_call_operand.vmem [shape: f32[1,128], index: 2, kind: input, shape index: {}]
  %s3 = inlined_call_operand.hbm [shape: bf16[128,384], index: 3, kind: input, shape index: {}]
  %s4 = inlined_call_operand.vmem [shape: f32[1,384], index: 4, kind: input, shape index: {}]
  %s5 = inlined_call_operand.hbm [shape: bf16[384,128], index: 5, kind: input, shape index: {}]
  %s6 = inlined_call_operand.vmem [shape: f32[1,128], index: 6, kind: input, shape index: {}]
  %s7 = inlined_call_operand.vmem [shape: bf16[8,128], index: 7, kind: input, shape index: {}]
  %s8 = inlined_call_operand.vmem [shape: f32[8,1], index: 8, kind: input, shape index: {}]
  %s9 = inlined_call_operand.hbm [shape: f32[8,128], index: 9, kind: output, shape index: {}]
  %s10 = sld [smem:[#allocation0]]
  $region54: #{tpu_custom_call.1} parent=0
    _
  %s12 = ssub.s32 1, %s10
  %s13 = scalar_select 0, %s12, %s10
  $region1: #{tpu_custom_call.1} parent=0
    #allocation2 [shape = 'u8[98304]{0}', space=vmem, size = 0x18000, scoped, tag = 'input window, operand 3, single buffered']
    #allocation3 [shape = 's32[1]{0}', space=sflag, size = 0x4, scoped, tag = 'scoped memory for tpu_custom_call.1']
    #allocation4 [shape = 's32[1]{0}', space=sflag, size = 0x4, scoped, tag = 'scoped memory for tpu_custom_call.1']
    #allocation5 [shape = 'u8[98304]{0}', space=vmem, size = 0x18000, scoped, tag = 'input window, operand 5, single buffered']
    #allocation6 [shape = 's32[1]{0}', space=sflag, size = 0x4, scoped, tag = 'scoped memory for tpu_custom_call.1']
    #allocation7 [shape = 'u8[4096]{0}', space=vmem, size = 0x1000, scoped, tag = 'output window, operand 0, single buffered']
    %14 = vsyncpa [#allocation3], 0
    %15 = vsyncpa [#allocation6], 0
    %16 = vsyncpa [#allocation4], 0
    // Predicated region
    $region2: #{tpu_custom_call.1} parent=1 // pred_check
      _
    $region3: #{tpu_custom_call.1} parent=1 // pred_check_branch
      %18 = sbr.rel (0) target = $region5
    $region4: #{tpu_custom_call.1} parent=1 // pred_region
      _
    $region5: #{tpu_custom_call.1} parent=1 // pred_fallthru
      _
    // Predicated region
    $region6: #{tpu_custom_call.1} parent=1 // pred_check
      _
    $region7: #{tpu_custom_call.1} parent=1 // pred_check_branch
      %20 = sbr.rel (0) target = $region9
    $region8: #{tpu_custom_call.1} parent=1 // pred_region
      _
    $region9: #{tpu_custom_call.1} parent=1 // pred_fallthru
      _
    // Predicated region
    $region10: #{tpu_custom_call.1} parent=1 // pred_check
      _
    $region11: #{tpu_custom_call.1} parent=1 // pred_check_branch
      %22 = sbr.rel (0) target = $region13
    $region12: #{tpu_custom_call.1} parent=1 // pred_region
      _
    $region13: #{tpu_custom_call.1} parent=1 // pred_fallthru
      _
    // Predicated region
    $region14: #{tpu_custom_call.1} parent=1 // pred_check
      _
    $region15: #{tpu_custom_call.1} parent=1 // pred_check_branch
      %24 = sbr.rel (0) target = $region17
    $region16: #{tpu_custom_call.1} parent=1 // pred_region
      %s26 = ssub.s32 3072, 3072
      %27 = vsyncadd [#allocation3], %s26
      %s28 = sshll.u32 [#allocation2], 4
      %s29 = int_to_ptr.vmem [resolvable:$true] %s28
      %34 = dma.hbm_to_vmem [thread:$0]  %s3, 3072, %s29, [#allocation3], 192, 192, 12
    $region17: #{tpu_custom_call.1} parent=1 // pred_fallthru
      _
    // Predicated region
    $region18: #{tpu_custom_call.1} parent=1 // pred_check
      _
    $region19: #{tpu_custom_call.1} parent=1 // pred_check_branch
      %36 = sbr.rel (0) target = $region21
    $region20: #{tpu_custom_call.1} parent=1 // pred_region
      _
    $region21: #{tpu_custom_call.1} parent=1 // pred_fallthru
      _
    // Predicated region
    $region22: #{tpu_custom_call.1} parent=1 // pred_check
      _
    $region23: #{tpu_custom_call.1} parent=1 // pred_check_branch
      %38 = sbr.rel (0) target = $region25
    $region24: #{tpu_custom_call.1} parent=1 // pred_region
      %s40 = ssub.s32 3072, 3072
      %41 = vsyncadd [#allocation6], %s40
      %s42 = sshll.u32 [#allocation5], 4
      %s43 = int_to_ptr.vmem [resolvable:$true] %s42
      %48 = dma.hbm_to_vmem [thread:$0]  %s5, 3072, %s43, [#allocation6], 64, 64, 4
    $region25: #{tpu_custom_call.1} parent=1 // pred_fallthru
      _
    // Predicated region
    $region26: #{tpu_custom_call.1} parent=1 // pred_check
      _
    $region27: #{tpu_custom_call.1} parent=1 // pred_check_branch
      %50 = sbr.rel (0) target = $region29
    $region28: #{tpu_custom_call.1} parent=1 // pred_region
      _
    $region29: #{tpu_custom_call.1} parent=1 // pred_fallthru
      _
    // Predicated region
    $region30: #{tpu_custom_call.1} parent=1 // pred_check
      _
    $region31: #{tpu_custom_call.1} parent=1 // pred_check_branch
      %52 = sbr.rel (0) target = $region33
    $region32: #{tpu_custom_call.1} parent=1 // pred_region
      _
    $region33: #{tpu_custom_call.1} parent=1 // pred_fallthru
      _
    // Predicated region
    $region34: #{tpu_custom_call.1} parent=1 // pred_check
      _
    $region35: #{tpu_custom_call.1} parent=1 // pred_check_branch
      %54 = sbr.rel (0) target = $region37
    $region36: #{tpu_custom_call.1} parent=1 // pred_region
      _
    $region37: #{tpu_custom_call.1} parent=1 // pred_fallthru
      _
    // Predicated region
    $region38: #{tpu_custom_call.1} parent=1 // pred_check
      _
    $region39: #{tpu_custom_call.1} parent=1 // pred_check_branch
      %56 = sbr.rel (0) target = $region41
    $region40: #{tpu_custom_call.1} parent=1 // pred_region
      %57 = dma.done [#allocation3], 3072
    $region41: #{tpu_custom_call.1} parent=1 // pred_fallthru
      _
    // Predicated region
    $region42: #{tpu_custom_call.1} parent=1 // pred_check
      _
    $region43: #{tpu_custom_call.1} parent=1 // pred_check_branch
      %59 = sbr.rel (0) target = $region45
    $region44: #{tpu_custom_call.1} parent=1 // pred_region
      %60 = dma.done [#allocation6], 3072
    $region45: #{tpu_custom_call.1} parent=1 // pred_fallthru
      _
    %v62 = vld [vmem:[%s0] sm:$0xff]
    %v63 = vld [vmem:[%s0 + $0x8] sm:$0xff]
    %v64 = vld [vmem:[%s0 + $0x10] sm:$0xff]
    %v65 = vld [vmem:[%s0 + $0x18] sm:$0xff]
    %v66 = vld [vmem:[%s0 + $0x20] sm:$0xff]
    %v67 = vld [vmem:[%s0 + $0x28] sm:$0xff]
    %v68 = vld [vmem:[%s0 + $0x30] sm:$0xff]
    %v69 = vld [vmem:[%s0 + $0x38] sm:$0xff]
    %v70 = vld [vmem:[%s0 + $0x40] sm:$0xff]
    %v71 = vld [vmem:[%s0 + $0x48] sm:$0xff]
    %v72 = vld [vmem:[%s0 + $0x50] sm:$0xff]
    %v73 = vld [vmem:[%s0 + $0x58] sm:$0xff]
    %v74 = vld [vmem:[%s0 + $0x60] sm:$0xff]
    %v75 = vld [vmem:[%s0 + $0x68] sm:$0xff]
    %v76 = vld [vmem:[%s0 + $0x70] sm:$0xff]
    %v77 = vld [vmem:[%s0 + $0x78] sm:$0xff]
    %v78 = vpack.c.bf16 %v63, %v62
    %v79 = vpack.c.bf16 %v65, %v64
    %v80 = vpack.c.bf16 %v67, %v66
    %v81 = vpack.c.bf16 %v69, %v68
    %v82 = vpack.c.bf16 %v71, %v70
    %v83 = vpack.c.bf16 %v73, %v72
    %v84 = vpack.c.bf16 %v75, %v74
    %v85 = vpack.c.bf16 %v77, %v76
    %v86 = vld [vmem:[%s1] sm:$0xf]
    %v87 = vld [vmem:[%s1 + $0x4] sm:$0xf]
    %v88 = vld [vmem:[%s1 + $0x8] sm:$0xf]
    %v89 = vld [vmem:[%s1 + $0xc] sm:$0xf]
    %v90 = vld [vmem:[%s2] sm:$0x1]
    %v92 = vlaneseq
    %v93 = vshrl.u32 %v92, 7
    %v94 = vsub.s32 0, %v93
    %v95 = vrot.slane %v90, %v94
    %v101 = vunpack.c.l.b16 %v86
    %v102 = vunpack.c.l.b16 %v87
    %v103 = vunpack.c.l.b16 %v88
    %v104 = vunpack.c.l.b16 %v89
    %v105 = vpack.c.b16 %v102, %v101
    %v106 = vpack.c.b16 %v104, %v103
    %vm109 = vcmask 261120
    %v111 = vsel %vm109, %v78, 0
    %v114 = vsel %vm109, %v79, 0
    %v117 = vsel %vm109, %v80, 0
    %v120 = vsel %vm109, %v81, 0
    %v123 = vsel %vm109, %v82, 0
    %v126 = vsel %vm109, %v83, 0
    %v129 = vsel %vm109, %v84, 0
    %v132 = vsel %vm109, %v85, 0
    %134 = vmatprep.subr.bf16.mxu0 0
    %135 = vmatpush1.bf16.msra.mxu0 %v105
    %136 = vmatprep.subr.bf16.mxu0 0
    %137 = vmatpush1.bf16.msra.mxu0 %v106
    %138 = vmatprep.subr.bf16.mxu0 0
    %139 = vmatpush1.bf16.msra.mxu0 0
    %140 = vmatprep.subr.bf16.mxu0 0
    %141 = vmatpush1.bf16.msra.mxu0 0
    %142 = vmatprep.subr.bf16.mxu0 0
    %143 = vmatpush1.bf16.msra.mxu0 0
    %144 = vmatprep.subr.bf16.mxu0 0
    %145 = vmatpush1.bf16.msra.mxu0 0
    %146 = vmatprep.subr.bf16.mxu0 0
    %147 = vmatpush1.bf16.msra.mxu0 0
    %148 = vmatprep.subr.bf16.mxu0 0
    %149 = vmatpush1.bf16.msra.mxu0 0
    %150 = vmatprep.subr.bf16.mxu0 0
    %151 = vmatpush1.bf16.msra.mxu0 0
    %152 = vmatprep.subr.bf16.mxu0 0
    %153 = vmatpush1.bf16.msra.mxu0 0
    %154 = vmatprep.subr.bf16.mxu0 0
    %155 = vmatpush1.bf16.msra.mxu0 0
    %156 = vmatprep.subr.bf16.mxu0 0
    %157 = vmatpush1.bf16.msra.mxu0 0
    %158 = vmatprep.subr.bf16.mxu0 0
    %159 = vmatpush1.bf16.msra.mxu0 0
    %160 = vmatprep.subr.bf16.mxu0 0
    %161 = vmatpush1.bf16.msra.mxu0 0
    %162 = vmatprep.subr.bf16.mxu0 0
    %163 = vmatpush1.bf16.msra.mxu0 0
    %164 = vmatprep.subr.bf16.mxu0 0
    %165 = vmatpush1.bf16.msra.mxu0 0
    %166 = vmatprep.mubr.bf16.mxu0 0
    %167 = vmatmul.mubr.bf16.gmra.mrb[0].mxu0 %v111
    %v168 = vpop.f32.mrb[0].mxu0
    %v169 = vadd.f32 %v95, %v168
    %v170 = vpop.f32.mrb[0].mxu0
    %v171 = vpop.f32.mrb[0].mxu0
    %v172 = vadd.f32 %v95, %v171
    %v173 = vpop.f32.mrb[0].mxu0
    %174 = vmatprep.mubr.bf16.mxu0 0
    %175 = vmatmul.mubr.bf16.gmra.mrb[0].mxu0 %v114
    %v176 = vpop.f32.mrb[0].mxu0
    %v177 = vadd.f32 %v95, %v176
    %v178 = vpop.f32.mrb[0].mxu0
    %v179 = vpop.f32.mrb[0].mxu0
    %v180 = vadd.f32 %v95, %v179
    %v181 = vpop.f32.mrb[0].mxu0
    %182 = vmatprep.mubr.bf16.mxu0 0
    %183 = vmatmul.mubr.bf16.gmra.mrb[0].mxu0 %v117
    %v184 = vpop.f32.mrb[0].mxu0
    %v185 = vadd.f32 %v95, %v184
    %v186 = vpop.f32.mrb[0].mxu0
    %v187 = vpop.f32.mrb[0].mxu0
    %v188 = vadd.f32 %v95, %v187
    %v189 = vpop.f32.mrb[0].mxu0
    %190 = vmatprep.mubr.bf16.mxu0 0
    %191 = vmatmul.mubr.bf16.gmra.mrb[0].mxu0 %v120
    %v192 = vpop.f32.mrb[0].mxu0
    %v193 = vadd.f32 %v95, %v192
    %v194 = vpop.f32.mrb[0].mxu0
    %v195 = vpop.f32.mrb[0].mxu0
    %v196 = vadd.f32 %v95, %v195
    %v197 = vpop.f32.mrb[0].mxu0
    %198 = vmatprep.mubr.bf16.mxu0 0
    %199 = vmatmul.mubr.bf16.gmra.mrb[0].mxu0 %v123
    %v200 = vpop.f32.mrb[0].mxu0
    %v201 = vadd.f32 %v95, %v200
    %v202 = vpop.f32.mrb[0].mxu0
    %v203 = vpop.f32.mrb[0].mxu0
    %v204 = vadd.f32 %v95, %v203
    %v205 = vpop.f32.mrb[0].mxu0
    %206 = vmatprep.mubr.bf16.mxu0 0
    %207 = vmatmul.mubr.bf16.gmra.mrb[0].mxu0 %v126
    %v208 = vpop.f32.mrb[0].mxu0
    %v209 = vadd.f32 %v95, %v208
    %v210 = vpop.f32.mrb[0].mxu0
    %v211 = vpop.f32.mrb[0].mxu0
    %v212 = vadd.f32 %v95, %v211
    %v213 = vpop.f32.mrb[0].mxu0
    %214 = vmatprep.mubr.bf16.mxu0 0
    %215 = vmatmul.mubr.bf16.gmra.mrb[0].mxu0 %v129
    %v216 = vpop.f32.mrb[0].mxu0
    %v217 = vadd.f32 %v95, %v216
    %v218 = vpop.f32.mrb[0].mxu0
    %v219 = vpop.f32.mrb[0].mxu0
    %v220 = vadd.f32 %v95, %v219
    %v221 = vpop.f32.mrb[0].mxu0
    %222 = vmatprep.mubr.bf16.mxu0 0
    %223 = vmatmul.mubr.bf16.gmra.mrb[0].mxu0 %v132
    %v224 = vpop.f32.mrb[0].mxu0
    %v225 = vadd.f32 %v95, %v224
    %v226 = vpop.f32.mrb[0].mxu0
    %v227 = vpop.f32.mrb[0].mxu0
    %v228 = vadd.f32 %v95, %v227
    %v229 = vpop.f32.mrb[0].mxu0
    %230 = vdwg.mxu0
    %v231 = vmax.f32 %v169, 0.0
    %v232 = vmax.f32 %v172, 0.0
    %v233 = vmax.f32 %v177, 0.0
    %v234 = vmax.f32 %v180, 0.0
    %v235 = vmax.f32 %v185, 0.0
    %v236 = vmax.f32 %v188, 0.0
    %v237 = vmax.f32 %v193, 0.0
    %v238 = vmax.f32 %v196, 0.0
    %v239 = vmax.f32 %v201, 0.0
    %v240 = vmax.f32 %v204, 0.0
    %v241 = vmax.f32 %v209, 0.0
    %v242 = vmax.f32 %v212, 0.0
    %v243 = vmax.f32 %v217, 0.0
    %v244 = vmax.f32 %v220, 0.0
    %v245 = vmax.f32 %v225, 0.0
    %v246 = vmax.f32 %v228, 0.0
    %v247 = vpack.c.bf16 %v232, %v231
    %v248 = vpack.c.bf16 %v234, %v233
    %v249 = vpack.c.bf16 %v236, %v235
    %v250 = vpack.c.bf16 %v238, %v237
    %v251 = vpack.c.bf16 %v240, %v239
    %v252 = vpack.c.bf16 %v242, %v241
    %v253 = vpack.c.bf16 %v244, %v243
    %v254 = vpack.c.bf16 %v246, %v245
    %v255 = vld [vmem:[#allocation2] sm:$0xff]
    %v256 = vld [vmem:[#allocation2 + $0x8] sm:$0xf]
    %v257 = vld [vmem:[#allocation2 + $0xc] sm:$0xff]
    %v258 = vld [vmem:[#allocation2 + $0x14] sm:$0xf]
    %v259 = vld [vmem:[#allocation2 + $0x18] sm:$0xff]
    %v260 = vld [vmem:[#allocation2 + $0x20] sm:$0xf]
    %v261 = vld [vmem:[#allocation2 + $0x24] sm:$0xff]
    %v262 = vld [vmem:[#allocation2 + $0x2c] sm:$0xf]
    %v263 = vld [vmem:[#allocation2 + $0x30] sm:$0xff]
    %v264 = vld [vmem:[#allocation2 + $0x38] sm:$0xf]
    %v265 = vld [vmem:[#allocation2 + $0x3c] sm:$0xff]
    %v266 = vld [vmem:[#allocation2 + $0x44] sm:$0xf]
    %v267 = vld [vmem:[#allocation2 + $0x48] sm:$0xff]
    %v268 = vld [vmem:[#allocation2 + $0x50] sm:$0xf]
    %v269 = vld [vmem:[#allocation2 + $0x54] sm:$0xff]
    %v270 = vld [vmem:[#allocation2 + $0x5c] sm:$0xf]
    %v271 = vld [vmem:[#allocation2 + $0x60] sm:$0xff]
    %v272 = vld [vmem:[#allocation2 + $0x68] sm:$0xf]
    %v273 = vld [vmem:[#allocation2 + $0x6c] sm:$0xff]
    %v274 = vld [vmem:[#allocation2 + $0x74] sm:$0xf]
    %v275 = vld [vmem:[#allocation2 + $0x78] sm:$0xff]
    %v276 = vld [vmem:[#allocation2 + $0x80] sm:$0xf]
    %v277 = vld [vmem:[#allocation2 + $0x84] sm:$0xff]
    %v278 = vld [vmem:[#allocation2 + $0x8c] sm:$0xf]
    %v279 = vld [vmem:[#allocation2 + $0x90] sm:$0xff]
    %v280 = vld [vmem:[#allocation2 + $0x98] sm:$0xf]
    %v281 = vld [vmem:[#allocation2 + $0x9c] sm:$0xff]
    %v282 = vld [vmem:[#allocation2 + $0xa4] sm:$0xf]
    %v283 = vld [vmem:[#allocation2 + $0xa8] sm:$0xff]
    %v284 = vld [vmem:[#allocation2 + $0xb0] sm:$0xf]
    %v285 = vld [vmem:[#allocation2 + $0xb4] sm:$0xff]
    %v286 = vld [vmem:[#allocation2 + $0xbc] sm:$0xf]
    %v287 = vld [vmem:[%s4] sm:$0x7]
    %v289 = vlaneseq
    %v290 = vshrl.u32 %v289, 7
    %v291 = vsub.s32 0, %v290
    %v292 = vrot.slane %v287, %v291
    %v293 = vlaneseq
    %v294 = vshrl.u32 %v293, 7
    %v295 = vsub.s32 1, %v294
    %v296 = vrot.slane %v287, %v295
    %v297 = vlaneseq
    %v298 = vshrl.u32 %v297, 7
    %v299 = vsub.s32 2, %v298
    %v300 = vrot.slane %v287, %v299
    %v336 = vunpack.c.l.b16 %v255
    %v337 = vunpack.c.h.b16 %v255
    %v338 = vunpack.c.l.b16 %v256
    %v339 = vunpack.c.l.b16 %v257
    %v340 = vunpack.c.h.b16 %v257
    %v341 = vunpack.c.l.b16 %v258
    %v342 = vunpack.c.l.b16 %v259
    %v343 = vunpack.c.h.b16 %v259
    %v344 = vunpack.c.l.b16 %v260
    %v345 = vunpack.c.l.b16 %v261
    %v346 = vunpack.c.h.b16 %v261
    %v347 = vunpack.c.l.b16 %v262
    %v348 = vunpack.c.l.b16 %v263
    %v349 = vunpack.c.h.b16 %v263
    %v350 = vunpack.c.l.b16 %v264
    %v351 = vunpack.c.l.b16 %v265
    %v352 = vunpack.c.h.b16 %v265
    %v353 = vunpack.c.l.b16 %v266
    %v354 = vunpack.c.l.b16 %v267
    %v355 = vunpack.c.h.b16 %v267
    %v356 = vunpack.c.l.b16 %v268
    %v357 = vunpack.c.l.b16 %v269
    %v358 = vunpack.c.h.b16 %v269
    %v359 = vunpack.c.l.b16 %v270
    %v360 = vunpack.c.l.b16 %v271
    %v361 = vunpack.c.h.b16 %v271
    %v362 = vunpack.c.l.b16 %v272
    %v363 = vunpack.c.l.b16 %v273
    %v364 = vunpack.c.h.b16 %v273
    %v365 = vunpack.c.l.b16 %v274
    %v366 = vunpack.c.l.b16 %v275
    %v367 = vunpack.c.h.b16 %v275
    %v368 = vunpack.c.l.b16 %v276
    %v369 = vunpack.c.l.b16 %v277
    %v370 = vunpack.c.h.b16 %v277
    %v371 = vunpack.c.l.b16 %v278
    %v372 = vunpack.c.l.b16 %v279
    %v373 = vunpack.c.h.b16 %v279
    %v374 = vunpack.c.l.b16 %v280
    %v375 = vunpack.c.l.b16 %v281
    %v376 = vunpack.c.h.b16 %v281
    %v377 = vunpack.c.l.b16 %v282
    %v378 = vunpack.c.l.b16 %v283
    %v379 = vunpack.c.h.b16 %v283
    %v380 = vunpack.c.l.b16 %v284
    %v381 = vunpack.c.l.b16 %v285
    %v382 = vunpack.c.h.b16 %v285
    %v383 = vunpack.c.l.b16 %v286
    %v384 = vpack.c.b16 %v339, %v336
    %v385 = vpack.c.b16 %v340, %v337
    %v386 = vpack.c.b16 %v341, %v338
    %v387 = vpack.c.b16 %v345, %v342
    %v388 = vpack.c.b16 %v346, %v343
    %v389 = vpack.c.b16 %v347, %v344
    %v390 = vpack.c.b16 %v351, %v348
    %v391 = vpack.c.b16 %v352, %v349
    %v392 = vpack.c.b16 %v353, %v350
    %v393 = vpack.c.b16 %v357, %v354
    %v394 = vpack.c.b16 %v358, %v355
    %v395 = vpack.c.b16 %v359, %v356
    %v396 = vpack.c.b16 %v363, %v360
    %v397 = vpack.c.b16 %v364, %v361
    %v398 = vpack.c.b16 %v365, %v362
    %v399 = vpack.c.b16 %v369, %v366
    %v400 = vpack.c.b16 %v370, %v367
    %v401 = vpack.c.b16 %v371, %v368
    %v402 = vpack.c.b16 %v375, %v372
    %v403 = vpack.c.b16 %v376, %v373
    %v404 = vpack.c.b16 %v377, %v374
    %v405 = vpack.c.b16 %v381, %v378
    %v406 = vpack.c.b16 %v382, %v379
    %v407 = vpack.c.b16 %v383, %v380
    %432 = vmatprep.subr.bf16.mxu0 %v385
    %433 = vmatpush1.bf16.msra.mxu0 %v384
    %434 = vmatprep.subr.bf16.mxu0 %v388
    %435 = vmatpush1.bf16.msra.mxu0 %v387
    %436 = vmatprep.subr.bf16.mxu0 %v391
    %437 = vmatpush1.bf16.msra.mxu0 %v390
    %438 = vmatprep.subr.bf16.mxu0 %v394
    %439 = vmatpush1.bf16.msra.mxu0 %v393
    %440 = vmatprep.subr.bf16.mxu0 %v397
    %441 = vmatpush1.bf16.msra.mxu0 %v396
    %442 = vmatprep.subr.bf16.mxu0 %v400
    %443 = vmatpush1.bf16.msra.mxu0 %v399
    %444 = vmatprep.subr.bf16.mxu0 %v403
    %445 = vmatpush1.bf16.msra.mxu0 %v402
    %446 = vmatprep.subr.bf16.mxu0 %v406
    %447 = vmatpush1.bf16.msra.mxu0 %v405
    %448 = vmatprep.subr.bf16.mxu0 0
    %449 = vmatpush1.bf16.msra.mxu0 0
    %450 = vmatprep.subr.bf16.mxu0 0
    %451 = vmatpush1.bf16.msra.mxu0 0
    %452 = vmatprep.subr.bf16.mxu0 0
    %453 = vmatpush1.bf16.msra.mxu0 0
    %454 = vmatprep.subr.bf16.mxu0 0
    %455 = vmatpush1.bf16.msra.mxu0 0
    %456 = vmatprep.subr.bf16.mxu0 0
    %457 = vmatpush1.bf16.msra.mxu0 0
    %458 = vmatprep.subr.bf16.mxu0 0
    %459 = vmatpush1.bf16.msra.mxu0 0
    %460 = vmatprep.subr.bf16.mxu0 0
    %461 = vmatpush1.bf16.msra.mxu0 0
    %462 = vmatprep.subr.bf16.mxu0 0
    %463 = vmatpush1.bf16.msra.mxu0 0
    %464 = vmatprep.mubr.bf16.mxu0 0
    %465 = vmatmul.mubr.bf16.gmra.mrb[0].mxu0 %v247
    %v466 = vpop.f32.mrb[0].mxu0
    %v467 = vadd.f32 %v292, %v466
    %v468 = vpop.f32.mrb[0].mxu0
    %v469 = vadd.f32 %v296, %v468
    %v470 = vpop.f32.mrb[0].mxu0
    %v471 = vadd.f32 %v292, %v470
    %v472 = vpop.f32.mrb[0].mxu0
    %v473 = vadd.f32 %v296, %v472
    %474 = vmatprep.mubr.bf16.mxu0 0
    %475 = vmatmul.mubr.bf16.gmra.mrb[0].mxu0 %v248
    %v476 = vpop.f32.mrb[0].mxu0
    %v477 = vadd.f32 %v292, %v476
    %v478 = vpop.f32.mrb[0].mxu0
    %v479 = vadd.f32 %v296, %v478
    %v480 = vpop.f32.mrb[0].mxu0
    %v481 = vadd.f32 %v292, %v480
    %v482 = vpop.f32.mrb[0].mxu0
    %v483 = vadd.f32 %v296, %v482
    %484 = vmatprep.mubr.bf16.mxu0 0
    %485 = vmatmul.mubr.bf16.gmra.mrb[0].mxu0 %v249
    %v486 = vpop.f32.mrb[0].mxu0
    %v487 = vadd.f32 %v292, %v486
    %v488 = vpop.f32.mrb[0].mxu0
    %v489 = vadd.f32 %v296, %v488
    %v490 = vpop.f32.mrb[0].mxu0
    %v491 = vadd.f32 %v292, %v490
    %v492 = vpop.f32.mrb[0].mxu0
    %v493 = vadd.f32 %v296, %v492
    %494 = vmatprep.mubr.bf16.mxu0 0
    %495 = vmatmul.mubr.bf16.gmra.mrb[0].mxu0 %v250
    %v496 = vpop.f32.mrb[0].mxu0
    %v497 = vadd.f32 %v292, %v496
    %v498 = vpop.f32.mrb[0].mxu0
    %v499 = vadd.f32 %v296, %v498
    %v500 = vpop.f32.mrb[0].mxu0
    %v501 = vadd.f32 %v292, %v500
    %v502 = vpop.f32.mrb[0].mxu0
    %v503 = vadd.f32 %v296, %v502
    %504 = vmatprep.mubr.bf16.mxu0 0
    %505 = vmatmul.mubr.bf16.gmra.mrb[0].mxu0 %v251
    %v506 = vpop.f32.mrb[0].mxu0
    %v507 = vadd.f32 %v292, %v506
    %v508 = vpop.f32.mrb[0].mxu0
    %v509 = vadd.f32 %v296, %v508
    %v510 = vpop.f32.mrb[0].mxu0
    %v511 = vadd.f32 %v292, %v510
    %v512 = vpop.f32.mrb[0].mxu0
    %v513 = vadd.f32 %v296, %v512
    %514 = vmatprep.mubr.bf16.mxu0 0
    %515 = vmatmul.mubr.bf16.gmra.mrb[0].mxu0 %v252
    %v516 = vpop.f32.mrb[0].mxu0
    %v517 = vadd.f32 %v292, %v516
    %v518 = vpop.f32.mrb[0].mxu0
    %v519 = vadd.f32 %v296, %v518
    %v520 = vpop.f32.mrb[0].mxu0
    %v521 = vadd.f32 %v292, %v520
    %v522 = vpop.f32.mrb[0].mxu0
    %v523 = vadd.f32 %v296, %v522
    %524 = vmatprep.mubr.bf16.mxu0 0
    %525 = vmatmul.mubr.bf16.gmra.mrb[0].mxu0 %v253
    %v526 = vpop.f32.mrb[0].mxu0
    %v527 = vadd.f32 %v292, %v526
    %v528 = vpop.f32.mrb[0].mxu0
    %v529 = vadd.f32 %v296, %v528
    %v530 = vpop.f32.mrb[0].mxu0
    %v531 = vadd.f32 %v292, %v530
    %v532 = vpop.f32.mrb[0].mxu0
    %v533 = vadd.f32 %v296, %v532
    %534 = vmatprep.mubr.bf16.mxu0 0
    %535 = vmatmul.mubr.bf16.gmra.mrb[0].mxu0 %v254
    %v536 = vpop.f32.mrb[0].mxu0
    %v537 = vadd.f32 %v292, %v536
    %v538 = vpop.f32.mrb[0].mxu0
    %v539 = vadd.f32 %v296, %v538
    %v540 = vpop.f32.mrb[0].mxu0
    %v541 = vadd.f32 %v292, %v540
    %v542 = vpop.f32.mrb[0].mxu0
    %v543 = vadd.f32 %v296, %v542
    %544 = vdwg.mxu0
    %545 = vmatprep.subr.bf16.mxu0 0
    %546 = vmatpush1.bf16.msra.mxu0 %v386
    %547 = vmatprep.subr.bf16.mxu0 0
    %548 = vmatpush1.bf16.msra.mxu0 %v389
    %549 = vmatprep.subr.bf16.mxu0 0
    %550 = vmatpush1.bf16.msra.mxu0 %v392
    %551 = vmatprep.subr.bf16.mxu0 0
    %552 = vmatpush1.bf16.msra.mxu0 %v395
    %553 = vmatprep.subr.bf16.mxu0 0
    %554 = vmatpush1.bf16.msra.mxu0 %v398
    %555 = vmatprep.subr.bf16.mxu0 0
    %556 = vmatpush1.bf16.msra.mxu0 %v401
    %557 = vmatprep.subr.bf16.mxu0 0
    %558 = vmatpush1.bf16.msra.mxu0 %v404
    %559 = vmatprep.subr.bf16.mxu0 0
    %560 = vmatpush1.bf16.msra.mxu0 %v407
    %561 = vmatprep.subr.bf16.mxu0 0
    %562 = vmatpush1.bf16.msra.mxu0 0
    %563 = vmatprep.subr.bf16.mxu0 0
    %564 = vmatpush1.bf16.msra.mxu0 0
    %565 = vmatprep.subr.bf16.mxu0 0
    %566 = vmatpush1.bf16.msra.mxu0 0
    %567 = vmatprep.subr.bf16.mxu0 0
    %568 = vmatpush1.bf16.msra.mxu0 0
    %569 = vmatprep.subr.bf16.mxu0 0
    %570 = vmatpush1.bf16.msra.mxu0 0
    %571 = vmatprep.subr.bf16.mxu0 0
    %572 = vmatpush1.bf16.msra.mxu0 0
    %573 = vmatprep.subr.bf16.mxu0 0
    %574 = vmatpush1.bf16.msra.mxu0 0
    %575 = vmatprep.subr.bf16.mxu0 0
    %576 = vmatpush1.bf16.msra.mxu0 0
    %577 = vmatprep.mubr.bf16.mxu0 0
    %578 = vmatmul.mubr.bf16.gmra.mrb[0].mxu0 %v247
    %v579 = vpop.f32.mrb[0].mxu0
    %v580 = vadd.f32 %v300, %v579
    %v581 = vpop.f32.mrb[0].mxu0
    %v582 = vpop.f32.mrb[0].mxu0
    %v583 = vadd.f32 %v300, %v582
    %v584 = vpop.f32.mrb[0].mxu0
    %585 = vmatprep.mubr.bf16.mxu0 0
    %586 = vmatmul.mubr.bf16.gmra.mrb[0].mxu0 %v248
    %v587 = vpop.f32.mrb[0].mxu0
    %v588 = vadd.f32 %v300, %v587
    %v589 = vpop.f32.mrb[0].mxu0
    %v590 = vpop.f32.mrb[0].mxu0
    %v591 = vadd.f32 %v300, %v590
    %v592 = vpop.f32.mrb[0].mxu0
    %593 = vmatprep.mubr.bf16.mxu0 0
    %594 = vmatmul.mubr.bf16.gmra.mrb[0].mxu0 %v249
    %v595 = vpop.f32.mrb[0].mxu0
    %v596 = vadd.f32 %v300, %v595
    %v597 = vpop.f32.mrb[0].mxu0
    %v598 = vpop.f32.mrb[0].mxu0
    %v599 = vadd.f32 %v300, %v598
    %v600 = vpop.f32.mrb[0].mxu0
    %601 = vmatprep.mubr.bf16.mxu0 0
    %602 = vmatmul.mubr.bf16.gmra.mrb[0].mxu0 %v250
    %v603 = vpop.f32.mrb[0].mxu0
    %v604 = vadd.f32 %v300, %v603
    %v605 = vpop.f32.mrb[0].mxu0
    %v606 = vpop.f32.mrb[0].mxu0
    %v607 = vadd.f32 %v300, %v606
    %v608 = vpop.f32.mrb[0].mxu0
    %609 = vmatprep.mubr.bf16.mxu0 0
    %610 = vmatmul.mubr.bf16.gmra.mrb[0].mxu0 %v251
    %v611 = vpop.f32.mrb[0].mxu0
    %v612 = vadd.f32 %v300, %v611
    %v613 = vpop.f32.mrb[0].mxu0
    %v614 = vpop.f32.mrb[0].mxu0
    %v615 = vadd.f32 %v300, %v614
    %v616 = vpop.f32.mrb[0].mxu0
    %617 = vmatprep.mubr.bf16.mxu0 0
    %618 = vmatmul.mubr.bf16.gmra.mrb[0].mxu0 %v252
    %v619 = vpop.f32.mrb[0].mxu0
    %v620 = vadd.f32 %v300, %v619
    %v621 = vpop.f32.mrb[0].mxu0
    %v622 = vpop.f32.mrb[0].mxu0
    %v623 = vadd.f32 %v300, %v622
    %v624 = vpop.f32.mrb[0].mxu0
    %625 = vmatprep.mubr.bf16.mxu0 0
    %626 = vmatmul.mubr.bf16.gmra.mrb[0].mxu0 %v253
    %v627 = vpop.f32.mrb[0].mxu0
    %v628 = vadd.f32 %v300, %v627
    %v629 = vpop.f32.mrb[0].mxu0
    %v630 = vpop.f32.mrb[0].mxu0
    %v631 = vadd.f32 %v300, %v630
    %v632 = vpop.f32.mrb[0].mxu0
    %633 = vmatprep.mubr.bf16.mxu0 0
    %634 = vmatmul.mubr.bf16.gmra.mrb[0].mxu0 %v254
    %v635 = vpop.f32.mrb[0].mxu0
    %v636 = vadd.f32 %v300, %v635
    %v637 = vpop.f32.mrb[0].mxu0
    %v638 = vpop.f32.mrb[0].mxu0
    %v639 = vadd.f32 %v300, %v638
    %v640 = vpop.f32.mrb[0].mxu0
    %641 = vdwg.mxu0
    %v642 = vmax.f32 %v467, 0.0
    %v643 = vmax.f32 %v469, 0.0
    %v644 = vmax.f32 %v580, 0.0
    %v645 = vmax.f32 %v471, 0.0
    %v646 = vmax.f32 %v473, 0.0
    %v647 = vmax.f32 %v583, 0.0
    %v648 = vmax.f32 %v477, 0.0
    %v649 = vmax.f32 %v479, 0.0
    %v650 = vmax.f32 %v588, 0.0
    %v651 = vmax.f32 %v481, 0.0
    %v652 = vmax.f32 %v483, 0.0
    %v653 = vmax.f32 %v591, 0.0
    %v654 = vmax.f32 %v487, 0.0
    %v655 = vmax.f32 %v489, 0.0
    %v656 = vmax.f32 %v596, 0.0
    %v657 = vmax.f32 %v491, 0.0
    %v658 = vmax.f32 %v493, 0.0
    %v659 = vmax.f32 %v599, 0.0
    %v660 = vmax.f32 %v497, 0.0
    %v661 = vmax.f32 %v499, 0.0
    %v662 = vmax.f32 %v604, 0.0
    %v663 = vmax.f32 %v501, 0.0
    %v664 = vmax.f32 %v503, 0.0
    %v665 = vmax.f32 %v607, 0.0
    %v666 = vmax.f32 %v507, 0.0
    %v667 = vmax.f32 %v509, 0.0
    %v668 = vmax.f32 %v612, 0.0
    %v669 = vmax.f32 %v511, 0.0
    %v670 = vmax.f32 %v513, 0.0
    %v671 = vmax.f32 %v615, 0.0
    %v672 = vmax.f32 %v517, 0.0
    %v673 = vmax.f32 %v519, 0.0
    %v674 = vmax.f32 %v620, 0.0
    %v675 = vmax.f32 %v521, 0.0
    %v676 = vmax.f32 %v523, 0.0
    %v677 = vmax.f32 %v623, 0.0
    %v678 = vmax.f32 %v527, 0.0
    %v679 = vmax.f32 %v529, 0.0
    %v680 = vmax.f32 %v628, 0.0
    %v681 = vmax.f32 %v531, 0.0
    %v682 = vmax.f32 %v533, 0.0
    %v683 = vmax.f32 %v631, 0.0
    %v684 = vmax.f32 %v537, 0.0
    %v685 = vmax.f32 %v539, 0.0
    %v686 = vmax.f32 %v636, 0.0
    %v687 = vmax.f32 %v541, 0.0
    %v688 = vmax.f32 %v543, 0.0
    %v689 = vmax.f32 %v639, 0.0
    %v690 = vpack.c.bf16 %v645, %v642
    %v691 = vpack.c.bf16 %v646, %v643
    %v692 = vpack.c.bf16 %v647, %v644
    %v693 = vpack.c.bf16 %v651, %v648
    %v694 = vpack.c.bf16 %v652, %v649
    %v695 = vpack.c.bf16 %v653, %v650
    %v696 = vpack.c.bf16 %v657, %v654
    %v697 = vpack.c.bf16 %v658, %v655
    %v698 = vpack.c.bf16 %v659, %v656
    %v699 = vpack.c.bf16 %v663, %v660
    %v700 = vpack.c.bf16 %v664, %v661
    %v701 = vpack.c.bf16 %v665, %v662
    %v702 = vpack.c.bf16 %v669, %v666
    %v703 = vpack.c.bf16 %v670, %v667
    %v704 = vpack.c.bf16 %v671, %v668
    %v705 = vpack.c.bf16 %v675, %v672
    %v706 = vpack.c.bf16 %v676, %v673
    %v707 = vpack.c.bf16 %v677, %v674
    %v708 = vpack.c.bf16 %v681, %v678
    %v709 = vpack.c.bf16 %v682, %v679
    %v710 = vpack.c.bf16 %v683, %v680
    %v711 = vpack.c.bf16 %v687, %v684
    %v712 = vpack.c.bf16 %v688, %v685
    %v713 = vpack.c.bf16 %v689, %v686
    %v714 = vld [vmem:[#allocation5] sm:$0xf]
    %v715 = vld [vmem:[#allocation5 + $0x4] sm:$0xf]
    %v716 = vld [vmem:[#allocation5 + $0x8] sm:$0xf]
    %v717 = vld [vmem:[#allocation5 + $0xc] sm:$0xf]
    %v718 = vld [vmem:[#allocation5 + $0x10] sm:$0xf]
    %v719 = vld [vmem:[#allocation5 + $0x14] sm:$0xf]
    %v720 = vld [vmem:[#allocation5 + $0x18] sm:$0xf]
    %v721 = vld [vmem:[#allocation5 + $0x1c] sm:$0xf]
    %v722 = vld [vmem:[#allocation5 + $0x20] sm:$0xf]
    %v723 = vld [vmem:[#allocation5 + $0x24] sm:$0xf]
    %v724 = vld [vmem:[#allocation5 + $0x28] sm:$0xf]
    %v725 = vld [vmem:[#allocation5 + $0x2c] sm:$0xf]
    %v726 = vld [vmem:[#allocation5 + $0x30] sm:$0xf]
    %v727 = vld [vmem:[#allocation5 + $0x34] sm:$0xf]
    %v728 = vld [vmem:[#allocation5 + $0x38] sm:$0xf]
    %v729 = vld [vmem:[#allocation5 + $0x3c] sm:$0xf]
    %v730 = vld [vmem:[#allocation5 + $0x40] sm:$0xf]
    %v731 = vld [vmem:[#allocation5 + $0x44] sm:$0xf]
    %v732 = vld [vmem:[#allocation5 + $0x48] sm:$0xf]
    %v733 = vld [vmem:[#allocation5 + $0x4c] sm:$0xf]
    %v734 = vld [vmem:[#allocation5 + $0x50] sm:$0xf]
    %v735 = vld [vmem:[#allocation5 + $0x54] sm:$0xf]
    %v736 = vld [vmem:[#allocation5 + $0x58] sm:$0xf]
    %v737 = vld [vmem:[#allocation5 + $0x5c] sm:$0xf]
    %v738 = vld [vmem:[#allocation5 + $0x60] sm:$0xf]
    %v739 = vld [vmem:[#allocation5 + $0x64] sm:$0xf]
    %v740 = vld [vmem:[#allocation5 + $0x68] sm:$0xf]
    %v741 = vld [vmem:[#allocation5 + $0x6c] sm:$0xf]
    %v742 = vld [vmem:[#allocation5 + $0x70] sm:$0xf]
    %v743 = vld [vmem:[#allocation5 + $0x74] sm:$0xf]
    %v744 = vld [vmem:[#allocation5 + $0x78] sm:$0xf]
    %v745 = vld [vmem:[#allocation5 + $0x7c] sm:$0xf]
    %v746 = vld [vmem:[#allocation5 + $0x80] sm:$0xf]
    %v747 = vld [vmem:[#allocation5 + $0x84] sm:$0xf]
    %v748 = vld [vmem:[#allocation5 + $0x88] sm:$0xf]
    %v749 = vld [vmem:[#allocation5 + $0x8c] sm:$0xf]
    %v750 = vld [vmem:[#allocation5 + $0x90] sm:$0xf]
    %v751 = vld [vmem:[#allocation5 + $0x94] sm:$0xf]
    %v752 = vld [vmem:[#allocation5 + $0x98] sm:$0xf]
    %v753 = vld [vmem:[#allocation5 + $0x9c] sm:$0xf]
    %v754 = vld [vmem:[#allocation5 + $0xa0] sm:$0xf]
    %v755 = vld [vmem:[#allocation5 + $0xa4] sm:$0xf]
    %v756 = vld [vmem:[#allocation5 + $0xa8] sm:$0xf]
    %v757 = vld [vmem:[#allocation5 + $0xac] sm:$0xf]
    %v758 = vld [vmem:[#allocation5 + $0xb0] sm:$0xf]
    %v759 = vld [vmem:[#allocation5 + $0xb4] sm:$0xf]
    %v760 = vld [vmem:[#allocation5 + $0xb8] sm:$0xf]
    %v761 = vld [vmem:[#allocation5 + $0xbc] sm:$0xf]
    %v762 = vld [vmem:[%s6] sm:$0x1]
    %v764 = vlaneseq
    %v765 = vshrl.u32 %v764, 7
    %v766 = vsub.s32 0, %v765
    %v767 = vrot.slane %v762, %v766
    %v817 = vunpack.c.l.b16 %v714
    %v818 = vunpack.c.l.b16 %v715
    %v819 = vunpack.c.l.b16 %v716
    %v820 = vunpack.c.l.b16 %v717
    %v821 = vunpack.c.l.b16 %v718
    %v822 = vunpack.c.l.b16 %v719
    %v823 = vunpack.c.l.b16 %v720
    %v824 = vunpack.c.l.b16 %v721
    %v825 = vunpack.c.l.b16 %v722
    %v826 = vunpack.c.l.b16 %v723
    %v827 = vunpack.c.l.b16 %v724
    %v828 = vunpack.c.l.b16 %v725
    %v829 = vunpack.c.l.b16 %v726
    %v830 = vunpack.c.l.b16 %v727
    %v831 = vunpack.c.l.b16 %v728
    %v832 = vunpack.c.l.b16 %v729
    %v833 = vunpack.c.l.b16 %v730
    %v834 = vunpack.c.l.b16 %v731
    %v835 = vunpack.c.l.b16 %v732
    %v836 = vunpack.c.l.b16 %v733
    %v837 = vunpack.c.l.b16 %v734
    %v838 = vunpack.c.l.b16 %v735
    %v839 = vunpack.c.l.b16 %v736
    %v840 = vunpack.c.l.b16 %v737
    %v841 = vunpack.c.l.b16 %v738
    %v842 = vunpack.c.l.b16 %v739
    %v843 = vunpack.c.l.b16 %v740
    %v844 = vunpack.c.l.b16 %v741
    %v845 = vunpack.c.l.b16 %v742
    %v846 = vunpack.c.l.b16 %v743
    %v847 = vunpack.c.l.b16 %v744
    %v848 = vunpack.c.l.b16 %v745
    %v849 = vunpack.c.l.b16 %v746
    %v850 = vunpack.c.l.b16 %v747
    %v851 = vunpack.c.l.b16 %v748
    %v852 = vunpack.c.l.b16 %v749
    %v853 = vunpack.c.l.b16 %v750
    %v854 = vunpack.c.l.b16 %v751
    %v855 = vunpack.c.l.b16 %v752
    %v856 = vunpack.c.l.b16 %v753
    %v857 = vunpack.c.l.b16 %v754
    %v858 = vunpack.c.l.b16 %v755
    %v859 = vunpack.c.l.b16 %v756
    %v860 = vunpack.c.l.b16 %v757
    %v861 = vunpack.c.l.b16 %v758
    %v862 = vunpack.c.l.b16 %v759
    %v863 = vunpack.c.l.b16 %v760
    %v864 = vunpack.c.l.b16 %v761
    %v865 = vpack.c.b16 %v818, %v817
    %v866 = vpack.c.b16 %v820, %v819
    %v867 = vpack.c.b16 %v822, %v821
    %v868 = vpack.c.b16 %v824, %v823
    %v869 = vpack.c.b16 %v826, %v825
    %v870 = vpack.c.b16 %v828, %v827
    %v871 = vpack.c.b16 %v830, %v829
    %v872 = vpack.c.b16 %v832, %v831
    %v873 = vpack.c.b16 %v834, %v833
    %v874 = vpack.c.b16 %v836, %v835
    %v875 = vpack.c.b16 %v838, %v837
    %v876 = vpack.c.b16 %v840, %v839
    %v877 = vpack.c.b16 %v842, %v841
    %v878 = vpack.c.b16 %v844, %v843
    %v879 = vpack.c.b16 %v846, %v845
    %v880 = vpack.c.b16 %v848, %v847
    %v881 = vpack.c.b16 %v850, %v849
    %v882 = vpack.c.b16 %v852, %v851
    %v883 = vpack.c.b16 %v854, %v853
    %v884 = vpack.c.b16 %v856, %v855
    %v885 = vpack.c.b16 %v858, %v857
    %v886 = vpack.c.b16 %v860, %v859
    %v887 = vpack.c.b16 %v862, %v861
    %v888 = vpack.c.b16 %v864, %v863
    %913 = vmatprep.subr.bf16.mxu0 0
    %914 = vmatpush1.bf16.msra.mxu0 %v865
    %915 = vmatprep.subr.bf16.mxu0 0
    %916 = vmatpush1.bf16.msra.mxu0 %v866
    %917 = vmatprep.subr.bf16.mxu0 0
    %918 = vmatpush1.bf16.msra.mxu0 %v867
    %919 = vmatprep.subr.bf16.mxu0 0
    %920 = vmatpush1.bf16.msra.mxu0 %v868
    %921 = vmatprep.subr.bf16.mxu0 0
    %922 = vmatpush1.bf16.msra.mxu0 %v869
    %923 = vmatprep.subr.bf16.mxu0 0
    %924 = vmatpush1.bf16.msra.mxu0 %v870
    %925 = vmatprep.subr.bf16.mxu0 0
    %926 = vmatpush1.bf16.msra.mxu0 %v871
    %927 = vmatprep.subr.bf16.mxu0 0
    %928 = vmatpush1.bf16.msra.mxu0 %v872
    %929 = vmatprep.subr.bf16.mxu0 0
    %930 = vmatpush1.bf16.msra.mxu0 %v873
    %931 = vmatprep.subr.bf16.mxu0 0
    %932 = vmatpush1.bf16.msra.mxu0 %v874
    %933 = vmatprep.subr.bf16.mxu0 0
    %934 = vmatpush1.bf16.msra.mxu0 %v875
    %935 = vmatprep.subr.bf16.mxu0 0
    %936 = vmatpush1.bf16.msra.mxu0 %v876
    %937 = vmatprep.subr.bf16.mxu0 0
    %938 = vmatpush1.bf16.msra.mxu0 %v877
    %939 = vmatprep.subr.bf16.mxu0 0
    %940 = vmatpush1.bf16.msra.mxu0 %v878
    %941 = vmatprep.subr.bf16.mxu0 0
    %942 = vmatpush1.bf16.msra.mxu0 %v879
    %943 = vmatprep.subr.bf16.mxu0 0
    %944 = vmatpush1.bf16.msra.mxu0 %v880
    %945 = vmatprep.mubr.bf16.mxu0 %v691
    %946 = vmatmul.mubr.bf16.gmra.mrb[0].mxu0 %v690
    %v947 = vpop.f32.mrb[0].mxu0
    %v948 = vadd.f32 %v767, %v947
    %v949 = vpop.f32.mrb[0].mxu0
    %v950 = vpop.f32.mrb[0].mxu0
    %v951 = vadd.f32 %v767, %v950
    %v952 = vpop.f32.mrb[0].mxu0
    %953 = vmatprep.mubr.bf16.mxu0 %v694
    %954 = vmatmul.mubr.bf16.gmra.mrb[0].mxu0 %v693
    %v955 = vpop.f32.mrb[0].mxu0
    %v956 = vadd.f32 %v767, %v955
    %v957 = vpop.f32.mrb[0].mxu0
    %v958 = vpop.f32.mrb[0].mxu0
    %v959 = vadd.f32 %v767, %v958
    %v960 = vpop.f32.mrb[0].mxu0
    %961 = vmatprep.mubr.bf16.mxu0 %v697
    %962 = vmatmul.mubr.bf16.gmra.mrb[0].mxu0 %v696
    %v963 = vpop.f32.mrb[0].mxu0
    %v964 = vadd.f32 %v767, %v963
    %v965 = vpop.f32.mrb[0].mxu0
    %v966 = vpop.f32.mrb[0].mxu0
    %v967 = vadd.f32 %v767, %v966
    %v968 = vpop.f32.mrb[0].mxu0
    %969 = vmatprep.mubr.bf16.mxu0 %v700
    %970 = vmatmul.mubr.bf16.gmra.mrb[0].mxu0 %v699
    %v971 = vpop.f32.mrb[0].mxu0
    %v972 = vadd.f32 %v767, %v971
    %v973 = vpop.f32.mrb[0].mxu0
    %v974 = vpop.f32.mrb[0].mxu0
    %v975 = vadd.f32 %v767, %v974
    %v976 = vpop.f32.mrb[0].mxu0
    %977 = vmatprep.mubr.bf16.mxu0 %v703
    %978 = vmatmul.mubr.bf16.gmra.mrb[0].mxu0 %v702
    %v979 = vpop.f32.mrb[0].mxu0
    %v980 = vadd.f32 %v767, %v979
    %v981 = vpop.f32.mrb[0].mxu0
    %v982 = vpop.f32.mrb[0].mxu0
    %v983 = vadd.f32 %v767, %v982
    %v984 = vpop.f32.mrb[0].mxu0
    %985 = vmatprep.mubr.bf16.mxu0 %v706
    %986 = vmatmul.mubr.bf16.gmra.mrb[0].mxu0 %v705
    %v987 = vpop.f32.mrb[0].mxu0
    %v988 = vadd.f32 %v767, %v987
    %v989 = vpop.f32.mrb[0].mxu0
    %v990 = vpop.f32.mrb[0].mxu0
    %v991 = vadd.f32 %v767, %v990
    %v992 = vpop.f32.mrb[0].mxu0
    %993 = vmatprep.mubr.bf16.mxu0 %v709
    %994 = vmatmul.mubr.bf16.gmra.mrb[0].mxu0 %v708
    %v995 = vpop.f32.mrb[0].mxu0
    %v996 = vadd.f32 %v767, %v995
    %v997 = vpop.f32.mrb[0].mxu0
    %v998 = vpop.f32.mrb[0].mxu0
    %v999 = vadd.f32 %v767, %v998
    %v1000 = vpop.f32.mrb[0].mxu0
    %1001 = vmatprep.mubr.bf16.mxu0 %v712
    %1002 = vmatmul.mubr.bf16.gmra.mrb[0].mxu0 %v711
    %v1003 = vpop.f32.mrb[0].mxu0
    %v1004 = vadd.f32 %v767, %v1003
    %v1005 = vpop.f32.mrb[0].mxu0
    %v1006 = vpop.f32.mrb[0].mxu0
    %v1007 = vadd.f32 %v767, %v1006
    %v1008 = vpop.f32.mrb[0].mxu0
    %1009 = vdwg.mxu0
    %1010 = vmatprep.subr.bf16.mxu0 0
    %1011 = vmatpush1.bf16.msra.mxu0 %v881
    %1012 = vmatprep.subr.bf16.mxu0 0
    %1013 = vmatpush1.bf16.msra.mxu0 %v882
    %1014 = vmatprep.subr.bf16.mxu0 0
    %1015 = vmatpush1.bf16.msra.mxu0 %v883
    %1016 = vmatprep.subr.bf16.mxu0 0
    %1017 = vmatpush1.bf16.msra.mxu0 %v884
    %1018 = vmatprep.subr.bf16.mxu0 0
    %1019 = vmatpush1.bf16.msra.mxu0 %v885
    %1020 = vmatprep.subr.bf16.mxu0 0
    %1021 = vmatpush1.bf16.msra.mxu0 %v886
    %1022 = vmatprep.subr.bf16.mxu0 0
    %1023 = vmatpush1.bf16.msra.mxu0 %v887
    %1024 = vmatprep.subr.bf16.mxu0 0
    %1025 = vmatpush1.bf16.msra.mxu0 %v888
    %1026 = vmatprep.subr.bf16.mxu0 0
    %1027 = vmatpush1.bf16.msra.mxu0 0
    %1028 = vmatprep.subr.bf16.mxu0 0
    %1029 = vmatpush1.bf16.msra.mxu0 0
    %1030 = vmatprep.subr.bf16.mxu0 0
    %1031 = vmatpush1.bf16.msra.mxu0 0
    %1032 = vmatprep.subr.bf16.mxu0 0
    %1033 = vmatpush1.bf16.msra.mxu0 0
    %1034 = vmatprep.subr.bf16.mxu0 0
    %1035 = vmatpush1.bf16.msra.mxu0 0
    %1036 = vmatprep.subr.bf16.mxu0 0
    %1037 = vmatpush1.bf16.msra.mxu0 0
    %1038 = vmatprep.subr.bf16.mxu0 0
    %1039 = vmatpush1.bf16.msra.mxu0 0
    %1040 = vmatprep.subr.bf16.mxu0 0
    %1041 = vmatpush1.bf16.msra.mxu0 0
    %1042 = vmatprep.mubr.bf16.mxu0 0
    %1043 = vmatmul.mubr.bf16.gmra.mrb[0].mxu0 %v692
    %v1044 = vpop.f32.mrb[0].mxu0
    %v1045 = vadd.f32 %v948, %v1044
    %v1046 = vpop.f32.mrb[0].mxu0
    %v1047 = vpop.f32.mrb[0].mxu0
    %v1048 = vadd.f32 %v951, %v1047
    %v1049 = vpop.f32.mrb[0].mxu0
    %1050 = vmatprep.mubr.bf16.mxu0 0
    %1051 = vmatmul.mubr.bf16.gmra.mrb[0].mxu0 %v695
    %v1052 = vpop.f32.mrb[0].mxu0
    %v1053 = vadd.f32 %v956, %v1052
    %v1054 = vpop.f32.mrb[0].mxu0
    %v1055 = vpop.f32.mrb[0].mxu0
    %v1056 = vadd.f32 %v959, %v1055
    %v1057 = vpop.f32.mrb[0].mxu0
    %1058 = vmatprep.mubr.bf16.mxu0 0
    %1059 = vmatmul.mubr.bf16.gmra.mrb[0].mxu0 %v698
    %v1060 = vpop.f32.mrb[0].mxu0
    %v1061 = vadd.f32 %v964, %v1060
    %v1062 = vpop.f32.mrb[0].mxu0
    %v1063 = vpop.f32.mrb[0].mxu0
    %v1064 = vadd.f32 %v967, %v1063
    %v1065 = vpop.f32.mrb[0].mxu0
    %1066 = vmatprep.mubr.bf16.mxu0 0
    %1067 = vmatmul.mubr.bf16.gmra.mrb[0].mxu0 %v701
    %v1068 = vpop.f32.mrb[0].mxu0
    %v1069 = vadd.f32 %v972, %v1068
    %v1070 = vpop.f32.mrb[0].mxu0
    %v1071 = vpop.f32.mrb[0].mxu0
    %v1072 = vadd.f32 %v975, %v1071
    %v1073 = vpop.f32.mrb[0].mxu0
    %1074 = vmatprep.mubr.bf16.mxu0 0
    %1075 = vmatmul.mubr.bf16.gmra.mrb[0].mxu0 %v704
    %v1076 = vpop.f32.mrb[0].mxu0
    %v1077 = vadd.f32 %v980, %v1076
    %v1078 = vpop.f32.mrb[0].mxu0
    %v1079 = vpop.f32.mrb[0].mxu0
    %v1080 = vadd.f32 %v983, %v1079
    %v1081 = vpop.f32.mrb[0].mxu0
    %1082 = vmatprep.mubr.bf16.mxu0 0
    %1083 = vmatmul.mubr.bf16.gmra.mrb[0].mxu0 %v707
    %v1084 = vpop.f32.mrb[0].mxu0
    %v1085 = vadd.f32 %v988, %v1084
    %v1086 = vpop.f32.mrb[0].mxu0
    %v1087 = vpop.f32.mrb[0].mxu0
    %v1088 = vadd.f32 %v991, %v1087
    %v1089 = vpop.f32.mrb[0].mxu0
    %1090 = vmatprep.mubr.bf16.mxu0 0
    %1091 = vmatmul.mubr.bf16.gmra.mrb[0].mxu0 %v710
    %v1092 = vpop.f32.mrb[0].mxu0
    %v1093 = vadd.f32 %v996, %v1092
    %v1094 = vpop.f32.mrb[0].mxu0
    %v1095 = vpop.f32.mrb[0].mxu0
    %v1096 = vadd.f32 %v999, %v1095
    %v1097 = vpop.f32.mrb[0].mxu0
    %1098 = vmatprep.mubr.bf16.mxu0 0
    %1099 = vmatmul.mubr.bf16.gmra.mrb[0].mxu0 %v713
    %v1100 = vpop.f32.mrb[0].mxu0
    %v1101 = vadd.f32 %v1004, %v1100
    %v1102 = vpop.f32.mrb[0].mxu0
    %v1103 = vpop.f32.mrb[0].mxu0
    %v1104 = vadd.f32 %v1007, %v1103
    %v1105 = vpop.f32.mrb[0].mxu0
    %1106 = vdwg.mxu0
    %v1107 = vmax.f32 %v1045, 0.0
    %v1108 = vmax.f32 %v1048, 0.0
    %v1109 = vmax.f32 %v1053, 0.0
    %v1110 = vmax.f32 %v1056, 0.0
    %v1111 = vmax.f32 %v1061, 0.0
    %v1112 = vmax.f32 %v1064, 0.0
    %v1113 = vmax.f32 %v1069, 0.0
    %v1114 = vmax.f32 %v1072, 0.0
    %v1115 = vmax.f32 %v1077, 0.0
    %v1116 = vmax.f32 %v1080, 0.0
    %v1117 = vmax.f32 %v1085, 0.0
    %v1118 = vmax.f32 %v1088, 0.0
    %v1119 = vmax.f32 %v1093, 0.0
    %v1120 = vmax.f32 %v1096, 0.0
    %v1121 = vmax.f32 %v1101, 0.0
    %v1122 = vmax.f32 %v1104, 0.0
    %1123 = vxpose.xlu0.b32.start [1/16] %v1107, 128
    %1124 = vxpose.xlu0.b32.cont [2/16] %v1108, 128
    %1125 = vxpose.xlu0.b32.cont [3/16] %v1109, 128
    %1126 = vxpose.xlu0.b32.cont [4/16] %v1110, 128
    %1127 = vxpose.xlu0.b32.cont [5/16] %v1111, 128
    %1128 = vxpose.xlu0.b32.cont [6/16] %v1112, 128
    %1129 = vxpose.xlu0.b32.cont [7/16] %v1113, 128
    %1130 = vxpose.xlu0.b32.cont [8/16] %v1114, 128
    %1131 = vxpose.xlu0.b32.cont [9/16] %v1115, 128
    %1132 = vxpose.xlu0.b32.cont [10/16] %v1116, 128
    %1133 = vxpose.xlu0.b32.cont [11/16] %v1117, 128
    %1134 = vxpose.xlu0.b32.cont [12/16] %v1118, 128
    %1135 = vxpose.xlu0.b32.cont [13/16] %v1119, 128
    %1136 = vxpose.xlu0.b32.cont [14/16] %v1120, 128
    %1137 = vxpose.xlu0.b32.cont [15/16] %v1121, 128
    %1138 = vxpose.xlu0.b32.end [16/16] %v1122, 128
    %v1139 = vpop.trf.xlu0
    %v1140 = vpop.trf.xlu0
    %v1141 = vpop.trf.xlu0
    %v1142 = vpop.trf.xlu0
    %v1143 = vpop.trf.xlu0
    %v1144 = vpop.trf.xlu0
    %v1145 = vpop.trf.xlu0
    %v1146 = vpop.trf.xlu0
    %v1147 = vpop.trf.xlu0
    %v1148 = vpop.trf.xlu0
    %v1149 = vpop.trf.xlu0
    %v1150 = vpop.trf.xlu0
    %v1151 = vpop.trf.xlu0
    %v1152 = vpop.trf.xlu0
    %v1153 = vpop.trf.xlu0
    %v1154 = vpop.trf.xlu0
    %v1155 = vpack.c.bf16 %v1140, %v1139
    %v1156 = vpack.c.bf16 %v1142, %v1141
    %v1157 = vpack.c.bf16 %v1144, %v1143
    %v1158 = vpack.c.bf16 %v1146, %v1145
    %v1159 = vpack.c.bf16 %v1148, %v1147
    %v1160 = vpack.c.bf16 %v1150, %v1149
    %v1161 = vpack.c.bf16 %v1152, %v1151
    %v1162 = vpack.c.bf16 %v1154, %v1153
    %v1163 = vld [vmem:[%s7] sm:$0xf]
    %v1164 = vld [vmem:[%s8] sm:$0xff]
    %1166 = vset.pattern.permute.xlu0 0
    %1167 = vperm.xlu0 %1166, %v1164
    %v1168 = vpop.permute.xlu0 %1167
    %1170 = vmatprep.subr.bf16.mxu0 0
    %1171 = vmatpush1.bf16.msra.mxu0 %v1155
    %1172 = vmatprep.subr.bf16.mxu0 0
    %1173 = vmatpush1.bf16.msra.mxu0 %v1156
    %1174 = vmatprep.subr.bf16.mxu0 0
    %1175 = vmatpush1.bf16.msra.mxu0 %v1157
    %1176 = vmatprep.subr.bf16.mxu0 0
    %1177 = vmatpush1.bf16.msra.mxu0 %v1158
    %1178 = vmatprep.subr.bf16.mxu0 0
    %1179 = vmatpush1.bf16.msra.mxu0 %v1159
    %1180 = vmatprep.subr.bf16.mxu0 0
    %1181 = vmatpush1.bf16.msra.mxu0 %v1160
    %1182 = vmatprep.subr.bf16.mxu0 0
    %1183 = vmatpush1.bf16.msra.mxu0 %v1161
    %1184 = vmatprep.subr.bf16.mxu0 0
    %1185 = vmatpush1.bf16.msra.mxu0 %v1162
    %1186 = vmatprep.subr.bf16.mxu0 0
    %1187 = vmatpush1.bf16.msra.mxu0 0
    %1188 = vmatprep.subr.bf16.mxu0 0
    %1189 = vmatpush1.bf16.msra.mxu0 0
    %1190 = vmatprep.subr.bf16.mxu0 0
    %1191 = vmatpush1.bf16.msra.mxu0 0
    %1192 = vmatprep.subr.bf16.mxu0 0
    %1193 = vmatpush1.bf16.msra.mxu0 0
    %1194 = vmatprep.subr.bf16.mxu0 0
    %1195 = vmatpush1.bf16.msra.mxu0 0
    %1196 = vmatprep.subr.bf16.mxu0 0
    %1197 = vmatpush1.bf16.msra.mxu0 0
    %1198 = vmatprep.subr.bf16.mxu0 0
    %1199 = vmatpush1.bf16.msra.mxu0 0
    %1200 = vmatprep.subr.bf16.mxu0 0
    %1201 = vmatpush1.bf16.msra.mxu0 0
    %1202 = vmatprep.mubr.bf16.mxu0 0
    %1203 = vmatmul.mubr.bf16.gmra.mrb[0].mxu0 %v1163
    %v1204 = vpop.f32.mrb[0].mxu0
    %v1205 = vadd.f32 %v1168, %v1204
    %v1206 = vpop.f32.mrb[0].mxu0
    %v1207 = vpop.f32.mrb[0].mxu0
    %v1208 = vpop.f32.mrb[0].mxu0
    %1209 = vdwg.mxu0
    %1210 = vst [vmem:[#allocation7] sm:$0xff] %v1205
    // Predicated region
    $region46: #{tpu_custom_call.1} parent=1 // pred_check
      _
    $region47: #{tpu_custom_call.1} parent=1 // pred_check_branch
      %1212 = sbr.rel (0) target = $region49
    $region48: #{tpu_custom_call.1} parent=1 // pred_region
      %s1214 = ssub.s32 128, 128
      %1215 = vsyncadd [#allocation4], %s1214
      %s1217 = sshll.u32 [#allocation7], 4
      %s1218 = int_to_ptr.vmem [resolvable:$true] %s1217
      %1220 = dma.vmem_to_hbm [thread:$0]  %s1218, 128, %s9, [#allocation4]
    $region49: #{tpu_custom_call.1} parent=1 // pred_fallthru
      _
    // Predicated region
    $region50: #{tpu_custom_call.1} parent=1 // pred_check
      _
    $region51: #{tpu_custom_call.1} parent=1 // pred_check_branch
      %1222 = sbr.rel (0) target = $region53
    $region52: #{tpu_custom_call.1} parent=1 // pred_region
      %1223 = dma.done [#allocation4], 128
    $region53: #{tpu_custom_call.1} parent=1 // pred_fallthru
      _
    %1224 = vsyncpa [#allocation3], 1
    %1225 = vsyncpa [#allocation6], 1
    %1226 = vsyncpa [#allocation4], 1

</llo_original>
